<compile_context>
chip_gen: v5e
topology: v5e:2x2
jax: 0.10.0
libtpu: 0.0.40
codegen_flags: <defaults>
</compile_context>

<pallas_src>
import jax
import jax.numpy as jnp
from jax.experimental import pallas as pl
from jax.experimental.pallas import tpu as pltpu


# ---------------------------------------------------------------------------
# Fused kernel: per grid step compute pos = table_tile @ W + b, then replicate
# it over the batch tile with plain row stores.
# ---------------------------------------------------------------------------
def _fused_pos_embed_kernel(table_ref, w_ref, b_ref, out_ref):
    # table_ref: (ts, d_emb)   w_ref: (d_emb, d_model)   b_ref: (1, d_model)
    # out_ref:   (bt, ts, d_model)
    pos = jnp.dot(table_ref[...], w_ref[...],
                  preferred_element_type=jnp.float32)        # (ts, d_model) f32
    pos = (pos + b_ref[...]).astype(out_ref.dtype)           # cast once
    # Replicate over the batch tile by re-storing the same vregs row by row;
    # the (bt, ts, d_model) broadcast value is never built in registers.
    for i in range(out_ref.shape[0]):                         # bt is a static int
        out_ref[i] = pos


# ---------------------------------------------------------------------------
# Tiling helpers
# ---------------------------------------------------------------------------
def _largest_divisor_tile(n, max_tile, sublane=1):
    """Largest t <= max_tile that divides n and is a multiple of `sublane`
    (or equals n). Falls back to n itself (block == full dim is always legal)."""
    max_tile = max(1, min(n, int(max_tile)))
    for t in range(max_tile, 0, -1):
        if n % t == 0 and (t % sublane == 0 or t == n):
            return t
    return n


def _per_buffer_budget_bytes():
    """Per-generation output-tile budget (per pipeline buffer)."""
    vmem_bytes = 64 * 1024 * 1024            # conservative default (v7x-class)
    try:
        info = pltpu.get_tpu_info()
        cap = getattr(info, "vmem_capacity_bytes", None)
        if cap:
            vmem_bytes = int(cap)
    except Exception:
        pass
    if vmem_bytes <= 64 * 1024 * 1024:       # v7x: 64 MiB/TC, 32 MiB scoped default
        return 2 * 1024 * 1024
    return 6 * 1024 * 1024                   # v5e / v6e: 128 MiB VMEM


# ---------------------------------------------------------------------------
# Wrapper
# ---------------------------------------------------------------------------
def positional_embedding(table, weight, bias, *, batch, seq_len, out_dtype=None):
    """table: (max_len, d_emb), weight: (d_emb, d_model), bias: (d_model,).

    Returns (batch, seq_len, d_model), matching
      PositionalEmbedding.forward(x) with x of shape (batch, seq_len, ...).
    """
    max_len, d_emb = table.shape
    d_model = weight.shape[1]
    assert seq_len <= max_len
    if out_dtype is None:
        out_dtype = table.dtype
    out_itemsize = jnp.dtype(out_dtype).itemsize

    # Only move the rows we actually use (lazy XLA slice before the call).
    table_s = table[:seq_len]                                 # (seq_len, d_emb)
    bias2d = bias.reshape(1, d_model)

    # ---- sequence tiling: keep the f32 `pos` tile within ~1/4 of the vreg file
    # so the row-store loop never spills; ts % 8 == 0 (or ts == seq_len).
    pos_vreg_budget = 64 * 1024                               # bytes of f32 pos/step
    max_ts = max(8, pos_vreg_budget // max(1, d_model * 4))
    ts = _largest_divisor_tile(seq_len, max_ts, sublane=8)
    grid_s = seq_len // ts

    # ---- batch tiling: per-generation output-tile byte budget (double buffered).
    budget = _per_buffer_budget_bytes()
    row_bytes = ts * d_model * out_itemsize
    bt_max = max(1, budget // max(1, row_bytes))
    bt_max = min(bt_max, 128)                                 # bound kernel unrolling
    if grid_s == 1 and batch >= 2:
        # guarantee >= 2 grid steps so both v7x TensorCores get work
        bt_max = min(bt_max, max(1, pl.cdiv(batch, 2)))
    bt = _largest_divisor_tile(batch, bt_max, sublane=1)
    grid_b = batch // bt

    grid = (grid_b, grid_s)

    out = pl.pallas_call(
        _fused_pos_embed_kernel,
        out_shape=jax.ShapeDtypeStruct((batch, seq_len, d_model), out_dtype),
        grid_spec=pltpu.PrefetchScalarGridSpec(
            num_scalar_prefetch=0,
            grid=grid,
            in_specs=[
                pl.BlockSpec((ts, d_emb), lambda b, s: (s, 0)),
                pl.BlockSpec((d_emb, d_model), lambda b, s: (0, 0)),
                pl.BlockSpec((1, d_model), lambda b, s: (0, 0)),
            ],
            out_specs=pl.BlockSpec((bt, ts, d_model), lambda b, s: (b, s, 0)),
        ),
        compiler_params=pltpu.CompilerParams(
            dimension_semantics=("parallel", "parallel"),
            vmem_limit_bytes=32 * 1024 * 1024),
        cost_estimate=pl.CostEstimate(
            flops=2 * grid_b * seq_len * d_emb * d_model,     # dot recomputed per batch tile
            transcendentals=0,
            bytes_accessed=(grid_b * seq_len * d_emb * table.dtype.itemsize
                            + d_emb * d_model * weight.dtype.itemsize
                            + d_model * bias.dtype.itemsize
                            + batch * seq_len * d_model * out_itemsize)),
    )(table_s, weight, bias2d)

    return out


if __name__ == "__main__":
    # Small shapes consistent with the module's forward:
    #   x: (batch, seq_len, ...) -> output (batch, seq_len, d_model)
    batch = 2
    seq_len = 8
    d_embedding = 32
    d_model = 64
    max_len = 16 * 3   # module does max_len * 3

    key = jax.random.PRNGKey(0)
    k_tab, k_w, k_b, k_x = jax.random.split(key, 4)

    # Deterministic synthetic parameters (shapes follow nn.Embedding / nn.Linear).
    table = jax.random.normal(k_tab, (max_len, d_embedding), dtype=jnp.float32)
    weight = jax.random.normal(k_w, (d_embedding, d_model), dtype=jnp.float32) * 0.1
    bias = jax.random.normal(k_b, (d_model,), dtype=jnp.float32) * 0.1

    # The forward only uses x.size(0) and x.size(1); make a dummy x anyway.
    x = jax.random.normal(k_x, (batch, seq_len, d_embedding), dtype=jnp.float32)

    out = positional_embedding(table, weight, bias,
                               batch=x.shape[0], seq_len=x.shape[1])
    out = jax.block_until_ready(out)

    # Pure-JAX reference of the PyTorch forward.
    ref_pos = table[:seq_len] @ weight + bias                  # (seq_len, d_model)
    ref = jnp.broadcast_to(ref_pos[None], (batch, seq_len, d_model))

    assert out.shape == (batch, seq_len, d_model)
    assert out.dtype == jnp.float32
    assert jnp.allclose(out, ref, atol=1e-5, rtol=1e-5)

    print("KERNEL_OK")
</pallas_src>

<mosaic_0001>
module attributes {stable_mosaic.version = 11 : i64} {
  func.func @_fused_pos_embed_kernel(%arg0: i32, %arg1: i32, %arg2: memref<8x32xf32, #tpu.memory_space<vmem>>, %arg3: memref<32x64xf32, #tpu.memory_space<vmem>>, %arg4: memref<1x64xf32, #tpu.memory_space<vmem>>, %arg5: memref<1x8x64xf32, #tpu.memory_space<vmem>>) attributes {dimension_semantics = [#tpu.dimension_semantics<parallel>, #tpu.dimension_semantics<parallel>], iteration_bounds = array<i64: 2, 1>, scalar_prefetch = 0 : i64, scratch_operands = 0 : i64, tpu.core_type = #tpu.core_type<tc>, window_params = [{transform_indices = @transform_0, window_bounds = array<i64: 8, 32>}, {pipeline_mode = #tpu.pipeline_mode<synchronous>, transform_indices = @transform_1, window_bounds = array<i64: 32, 64>}, {pipeline_mode = #tpu.pipeline_mode<synchronous>, transform_indices = @transform_2, window_bounds = array<i64: 1, 64>}, {transform_indices = @transform_3, window_bounds = array<i64: 1, 8, 64>}]} {
    %c0 = arith.constant 0 : index
    %c0_0 = arith.constant 0 : index
    %0 = vector.load %arg2[%c0, %c0_0] : memref<8x32xf32, #tpu.memory_space<vmem>>, vector<8x32xf32>
    %c0_1 = arith.constant 0 : index
    %c0_2 = arith.constant 0 : index
    %1 = vector.load %arg3[%c0_1, %c0_2] : memref<32x64xf32, #tpu.memory_space<vmem>>, vector<32x64xf32>
    %cst = arith.constant dense<0.000000e+00> : vector<8x64xf32>
    %2 = tpu.matmul %0, %1, %cst {dimension_numbers = #tpu.dot_dimension_numbers<[1], [0], [0], [1], [0, 0, 1, 1], [], []>} : vector<8x32xf32>, vector<32x64xf32>, vector<8x64xf32> -> vector<8x64xf32>
    %c0_3 = arith.constant 0 : index
    %c0_4 = arith.constant 0 : index
    %3 = vector.load %arg4[%c0_3, %c0_4] : memref<1x64xf32, #tpu.memory_space<vmem>>, vector<1x64xf32>
    %4 = vector.broadcast %3 : vector<1x64xf32> to vector<8x64xf32>
    %5 = arith.addf %2, %4 : vector<8x64xf32>
    %c0_5 = arith.constant 0 : index
    %c0_6 = arith.constant 0 : index
    %c0_7 = arith.constant 0 : index
    %6 = vector.load %arg5[%c0_5, %c0_6, %c0_7] : memref<1x8x64xf32, #tpu.memory_space<vmem>>, vector<1x8x64xf32>
    %7 = vector.shape_cast %6 : vector<1x8x64xf32> to vector<8x64xf32>
    %8 = vector.shape_cast %5 : vector<8x64xf32> to vector<1x8x64xf32>
    tpu.vector_store %arg5[%c0_5, %c0_6, %c0_7], %8 {strides = array<i32>} : memref<1x8x64xf32, #tpu.memory_space<vmem>>, vector<1x8x64xf32>,
    return
  }
  func.func @transform_0(%arg0: i32, %arg1: i32) -> (i32, i32) {
    %c0_i32 = arith.constant 0 : i32
    %c0_i32_0 = arith.constant 0 : i32
    return %arg1, %c0_i32 : i32, i32
  }
  func.func @transform_1(%arg0: i32, %arg1: i32) -> (i32, i32) {
    %c0_i32 = arith.constant 0 : i32
    %c0_i32_0 = arith.constant 0 : i32
    %c0_i32_1 = arith.constant 0 : i32
    return %c0_i32, %c0_i32_0 : i32, i32
  }
  func.func @transform_2(%arg0: i32, %arg1: i32) -> (i32, i32) {
    %c0_i32 = arith.constant 0 : i32
    %c0_i32_0 = arith.constant 0 : i32
    %c0_i32_1 = arith.constant 0 : i32
    return %c0_i32, %c0_i32_0 : i32, i32
  }
  func.func @transform_3(%arg0: i32, %arg1: i32) -> (i32, i32, i32) {
    %c0_i32 = arith.constant 0 : i32
    %c0_i32_0 = arith.constant 0 : i32
    return %arg0, %arg1, %c0_i32 : i32, i32, i32
  }
}

</mosaic_0001>

<llo_original>
// kernel: tpu_custom_call.1
$region0: #{tpu_custom_call.1}
  #allocation0 [shape = 'u32[]', space=smem, size = 0x4, offset = 0x4, fixed_abs, tag = 'smem constant byte address 0x4 - core index']
  #allocation1 [shape = 'u32[72,128]{1,0:T(1,128)}', space=vmem, size = 0x9000, scoped, tag = 'internal scratch']
  %s0 = inlined_call_operand.hbm [shape: f32[8,32], index: 0, kind: input, shape index: {}]
  %s1 = inlined_call_operand.hbm [shape: f32[32,64], index: 1, kind: input, shape index: {}]
  %s2 = inlined_call_operand.vmem [shape: f32[1,64], index: 2, kind: input, shape index: {}]
  %s3 = inlined_call_operand.hbm [shape: f32[2,8,64], index: 3, kind: output, shape index: {}]
  %s4 = sld [smem:[#allocation0]]
  $region53: #{tpu_custom_call.1} parent=0
    _
  %s6 = ssub.s32 1, %s4
  %s7 = scalar_select 0, %s6, %s4
  $region1: #{tpu_custom_call.1} parent=0
    #allocation2 [shape = 'u8[4096]{0}', space=vmem, size = 0x1000, scoped, tag = 'input window, operand 0, single buffered']
    #allocation3 [shape = 's32[2]{0}', space=sflag, size = 0x8, scoped, tag = 'scoped memory for tpu_custom_call.1']
    #allocation4 [shape = 's32[2]{0}', space=sflag, size = 0x8, scoped, tag = 'scoped memory for tpu_custom_call.1']
    #allocation5 [shape = 'u8[16384]{0}', space=vmem, size = 0x4000, scoped, tag = 'input window, operand 1, single buffered']
    #allocation6 [shape = 's32[1]{0}', space=sflag, size = 0x4, scoped, tag = 'scoped memory for tpu_custom_call.1']
    #allocation7 [shape = 'u8[8192]{0}', space=vmem, size = 0x2000, scoped, tag = 'output window, operand 0']
    %8 = vsyncpa [#allocation3], 0
    %9 = vsyncpa [#allocation6], 0
    %10 = vsyncpa [#allocation4], 0
    %s11 = scalar_lea.sflag [#allocation4], 1
    %12 = vsyncpa %s11, 0
    loop: start=0, step=1, limit=4
    $region2: #{tpu_custom_call.1} parent=1 // loop_pre_header
      _
    $region3: #{tpu_custom_call.1} parent=1 // loop_header
      %s14 = sphi 0, %s18
      %p15 = scmp.ge.s32.totalorder %s14, 4
      %s21 = sphi 0, %s33
      %s22 = sphi 0, %s29
      %s23 = sphi 0, %s21
      %s24 = sphi 0, %s22
      %s25 = sphi 0, %s23
      %s26 = sphi 0, %s24
      %s36 = sphi 0, %s38
      %s39 = sphi 0, %s36
      %s40 = sphi 0, %s39
      %s56 = sphi 0, %s40
      %s60 = sphi 0, %s60
      %s62 = sphi 0, %s60
      %s63 = sphi 0, %s62
      %s77 = sphi 0, %s63
      %s81 = sphi 0, %s81
      %s83 = sphi 0, %s81
      %s84 = sphi 0, %s83
      %s98 = sphi 0, %s84
      %s106 = sphi 0, %s108
      %s109 = sphi 0, %s106
      %s110 = sphi 0, %s109
      %s126 = sphi 0, %s110
    $region4: #{tpu_custom_call.1} parent=1 // loop_header_branch
      %17 = sbr.rel (%p15) target = $region8
    $region5: #{tpu_custom_call.1} parent=1 // loop_body
      %s19 = ssub.s32 %s14, 1
      %s20 = ssub.s32 %s14, 2
      %s27 = sadd.s32 1, %s22
      %p28 = scmp.ge.s32.totalorder %s27, 1
      %s29 = scalar_select %p28, 0, %s27
      %s30 = sadd.s32 1, %s21
      %s31 = scalar_select %p28, %s30, %s21
      %p32 = scmp.ge.s32.totalorder %s31, 2
      %s33 = scalar_select %p32, 0, %s31
      %s34 = ssub.s32 %s22, %s29
      %p35 = scmp.eq.s32.totalorder %s34, 0
      %s37 = sadd.s32 %s36, 1
      %s38 = scalar_select %p35, %s36, %s37
      %p41 = pneg %p35
      %p42 = scmp.eq.s32.totalorder %s14, 1
      %p43 = por %p41, %p42
      %p44 = scmp.ne.s32.totalorder %s36, %s39
      %p45 = scmp.eq.s32.totalorder %s14, 0
      %p46 = por %p44, %p45
      %p47 = scmp.ne.s32.totalorder %s36, %s39
      %p48 = scmp.eq.s32.totalorder %s19, 1
      %p49 = por %p47, %p48
      %p50 = scmp.ne.s32.totalorder %s39, %s40
      %p51 = scmp.eq.s32.totalorder %s19, 0
      %p52 = por %p50, %p51
      %p53 = scmp.ne.s32.totalorder %s39, %s40
      %p54 = scmp.eq.s32.totalorder %s20, 1
      %p55 = por %p53, %p54
      %p57 = scmp.ne.s32.totalorder %s40, %s56
      %p58 = scmp.eq.s32.totalorder %s20, 0
      %p59 = por %p57, %p58
      %s61 = sadd.s32 %s60, 1
      %p64 = scmp.eq.s32.totalorder %s14, 1
      %p65 = scmp.ne.s32.totalorder %s60, %s62
      %p66 = scmp.eq.s32.totalorder %s14, 0
      %p67 = por %p65, %p66
      %p68 = scmp.ne.s32.totalorder %s60, %s62
      %p69 = scmp.eq.s32.totalorder %s19, 1
      %p70 = por %p68, %p69
      %p71 = scmp.ne.s32.totalorder %s62, %s63
      %p72 = scmp.eq.s32.totalorder %s19, 0
      %p73 = por %p71, %p72
      %p74 = scmp.ne.s32.totalorder %s62, %s63
      %p75 = scmp.eq.s32.totalorder %s20, 1
      %p76 = por %p74, %p75
      %p78 = scmp.ne.s32.totalorder %s63, %s77
      %p79 = scmp.eq.s32.totalorder %s20, 0
      %p80 = por %p78, %p79
      %s82 = sadd.s32 %s81, 1
      %p85 = scmp.eq.s32.totalorder %s14, 1
      %p86 = scmp.ne.s32.totalorder %s81, %s83
      %p87 = scmp.eq.s32.totalorder %s14, 0
      %p88 = por %p86, %p87
      %p89 = scmp.ne.s32.totalorder %s81, %s83
      %p90 = scmp.eq.s32.totalorder %s19, 1
      %p91 = por %p89, %p90
      %p92 = scmp.ne.s32.totalorder %s83, %s84
      %p93 = scmp.eq.s32.totalorder %s19, 0
      %p94 = por %p92, %p93
      %p95 = scmp.ne.s32.totalorder %s83, %s84
      %p96 = scmp.eq.s32.totalorder %s20, 1
      %p97 = por %p95, %p96
      %p99 = scmp.ne.s32.totalorder %s84, %s98
      %p100 = scmp.eq.s32.totalorder %s20, 0
      %p101 = por %p99, %p100
      %s102 = ssub.s32 %s21, %s33
      %s103 = ssub.s32 %s22, %s29
      %s104 = sor.u32 %s102, %s103
      %p105 = scmp.eq.s32.totalorder %s104, 0
      %s107 = sadd.s32 %s106, 1
      %s108 = scalar_select %p105, %s106, %s107
      %p111 = pneg %p105
      %p112 = scmp.eq.s32.totalorder %s14, 1
      %p113 = por %p111, %p112
      %p114 = scmp.ne.s32.totalorder %s106, %s109
      %p115 = scmp.eq.s32.totalorder %s14, 0
      %p116 = por %p114, %p115
      %p117 = scmp.ne.s32.totalorder %s106, %s109
      %p118 = scmp.eq.s32.totalorder %s19, 1
      %p119 = por %p117, %p118
      %p120 = scmp.ne.s32.totalorder %s109, %s110
      %p121 = scmp.eq.s32.totalorder %s19, 0
      %p122 = por %p120, %p121
      %p123 = scmp.ne.s32.totalorder %s109, %s110
      %p124 = scmp.eq.s32.totalorder %s20, 1
      %p125 = por %p123, %p124
      %p127 = scmp.ne.s32.totalorder %s110, %s126
      %p128 = scmp.eq.s32.totalorder %s20, 0
      %p129 = por %p127, %p128
      %p130 = scmp.le.s32.totalorder 1, %s14
      %p131 = scmp.lt.s32.totalorder %s14, 3
      %p132 = pnand %p130, %p131
      %p133 = pneg %p132
      // Predicated region
      $region9: #{tpu_custom_call.1} parent=5 // pred_check
        _
      $region10: #{tpu_custom_call.1} parent=5 // pred_check_branch
        %135 = sbr.rel (%p132) target = $region12
      $region11: #{tpu_custom_call.1} parent=5 // pred_region
        %s136 = ssub.s32 %s14, 1
        // Predicated region
        $region13: #{tpu_custom_call.1} parent=11 // pred_check
          %p137 = pneg %p52
        $region14: #{tpu_custom_call.1} parent=11 // pred_check_branch
          %139 = sbr.rel (%p137) target = $region16
        $region15: #{tpu_custom_call.1} parent=11 // pred_region
          %141 = vsyncadd [#allocation3], 0
          %s142 = smul.addr %s24, 8
          %s143 = scalar_lea.hbm %s0, %s142
          %s145 = sshll.u32 %s143, 4
          %s146 = int_to_ptr.hbm [resolvable:$true] %s145
          %s147 = sshll.u32 [#allocation2], 4
          %s148 = int_to_ptr.vmem [resolvable:$true] %s147
          %150 = dma.hbm_to_vmem [thread:$0]  %s146, 128, %s148, [#allocation3]
        $region16: #{tpu_custom_call.1} parent=11 // pred_fallthru
          _
        // Predicated region
        $region17: #{tpu_custom_call.1} parent=11 // pred_check
          %p151 = pneg %p73
        $region18: #{tpu_custom_call.1} parent=11 // pred_check_branch
          %153 = sbr.rel (%p151) target = $region20
        $region19: #{tpu_custom_call.1} parent=11 // pred_region
          %155 = vsyncadd [#allocation6], 0
          %s156 = sshll.u32 %s1, 4
          %s157 = int_to_ptr.hbm [resolvable:$true] %s156
          %s158 = sshll.u32 [#allocation5], 4
          %s159 = int_to_ptr.vmem [resolvable:$true] %s158
          %164 = dma.hbm_to_vmem [thread:$0]  %s157, 512, %s159, [#allocation6], 128, 128, 8
        $region20: #{tpu_custom_call.1} parent=11 // pred_fallthru
          _
        // Predicated region
        $region21: #{tpu_custom_call.1} parent=11 // pred_check
          %p165 = pneg %p94
        $region22: #{tpu_custom_call.1} parent=11 // pred_check_branch
          %167 = sbr.rel (%p165) target = $region24
        $region23: #{tpu_custom_call.1} parent=11 // pred_region
          _
        $region24: #{tpu_custom_call.1} parent=11 // pred_fallthru
          _
      $region12: #{tpu_custom_call.1} parent=5 // pred_fallthru
        _
      %p168 = scmp.lt.s32.totalorder %s14, 2
      // Predicated region
      $region25: #{tpu_custom_call.1} parent=5 // pred_check
        %p169 = pneg %p168
      $region26: #{tpu_custom_call.1} parent=5 // pred_check_branch
        %171 = sbr.rel (%p169) target = $region28
      $region27: #{tpu_custom_call.1} parent=5 // pred_region
        _
      $region28: #{tpu_custom_call.1} parent=5 // pred_fallthru
        _
      %p172 = scmp.le.s32.totalorder 1, %s14
      %p173 = scmp.lt.s32.totalorder %s14, 3
      %p174 = pnand %p172, %p173
      %p175 = pneg %p174
      // Predicated region
      $region29: #{tpu_custom_call.1} parent=5 // pred_check
        _
      $region30: #{tpu_custom_call.1} parent=5 // pred_check_branch
        %177 = sbr.rel (%p174) target = $region32
      $region31: #{tpu_custom_call.1} parent=5 // pred_region
        %s178 = ssub.s32 %s14, 1
        // Predicated region
        $region33: #{tpu_custom_call.1} parent=31 // pred_check
          %p179 = pneg %p52
        $region34: #{tpu_custom_call.1} parent=31 // pred_check_branch
          %181 = sbr.rel (%p179) target = $region36
        $region35: #{tpu_custom_call.1} parent=31 // pred_region
          %183 = dma.done [#allocation3], 128
        $region36: #{tpu_custom_call.1} parent=31 // pred_fallthru
          _
        // Predicated region
        $region37: #{tpu_custom_call.1} parent=31 // pred_check
          %p184 = pneg %p73
        $region38: #{tpu_custom_call.1} parent=31 // pred_check_branch
          %186 = sbr.rel (%p184) target = $region40
        $region39: #{tpu_custom_call.1} parent=31 // pred_region
          %188 = dma.done [#allocation6], 512
        $region40: #{tpu_custom_call.1} parent=31 // pred_fallthru
          _
        %p189 = pneg %p52
        %p190 = pneg %p49
        %p191 = pneg %p73
        %p192 = pneg %p70
        %p193 = pneg %p94
        %p194 = pneg %p91
        %p195 = pneg %p122
        %p196 = pneg %p119
        %s197 = sand.u32 %s109, 1
        %s198 = scalar_lea.sflag [#allocation4], %s197
        %s199 = sand.u32 %s109, 1
        %s200 = smul.addr %s199, 8
        %s201 = scalar_lea.vmem [#allocation7], %s200
        %v202 = vld [vmem:[#allocation2] sm:$0xff]
        %v203 = vld [vmem:[#allocation5] sm:$0xff]
        %v204 = vld [vmem:[#allocation5 + $0x8] sm:$0xff]
        %v205 = vld [vmem:[#allocation5 + $0x10] sm:$0xff]
        %v206 = vld [vmem:[#allocation5 + $0x18] sm:$0xff]
        %v207 = vld [vmem:[%s2] sm:$0x1]
        %v209 = vperm.slane %v207, 0
        %vm211 = vcmask 261120
        %v213 = vsel %vm211, %v202, 0
        %215 = vmatpush.msra.mxu0 0.0
        %216 = vmatpush.msra.mxu0 0.0
        %217 = vmatpush.msra.mxu0 0.0
        %218 = vmatpush.msra.mxu0 0.0
        %219 = vmatpush.msra.mxu0 0.0
        %220 = vmatpush.msra.mxu0 0.0
        %221 = vmatpush.msra.mxu0 0.0
        %222 = vmatpush.msra.mxu0 0.0
        %223 = vmatpush.msra.mxu0 0.0
        %224 = vmatpush.msra.mxu0 0.0
        %225 = vmatpush.msra.mxu0 0.0
        %226 = vmatpush.msra.mxu0 0.0
        %227 = vmatpush.msra.mxu0 %v206
        %228 = vmatpush.msra.mxu0 %v205
        %229 = vmatpush.msra.mxu0 %v204
        %230 = vmatpush.msra.mxu0 %v203
        %231 = vmatmul.f32.gmra.mxu0 %v213
        %v232 = vpop.f32.mrf.mxu0
        %v233 = vadd.f32 %v209, %v232
        %234 = vdwg.mxu0
        %vm235 = vcmask 523264
        %236 = vst.msk [vmem:[%s201] sm:$0xff] %vm235, %v233
        %s237 = sand.u32 %s109, 1
        %s238 = scalar_lea.sflag [#allocation4], %s237
        %s239 = sand.u32 %s109, 1
        %s240 = smul.addr %s239, 8
        %s241 = scalar_lea.vmem [#allocation7], %s240
        // Predicated region
        $region41: #{tpu_custom_call.1} parent=31 // pred_check
          %p242 = pneg %p119
        $region42: #{tpu_custom_call.1} parent=31 // pred_check_branch
          %244 = sbr.rel (%p242) target = $region44
        $region43: #{tpu_custom_call.1} parent=31 // pred_region
          %246 = vsyncadd %s238, 0
          %s247 = sadd.s32 %s24, %s23
          %s248 = smul.addr %s247, 8
          %s249 = scalar_lea.hbm %s3, %s248
          %s251 = sshll.u32 %s241, 4
          %s252 = int_to_ptr.vmem [resolvable:$true] %s251
          %s253 = sshll.u32 %s249, 4
          %s254 = int_to_ptr.hbm [resolvable:$true] %s253
          %256 = dma.vmem_to_hbm [thread:$0]  %s252, 128, %s254, %s238
        $region44: #{tpu_custom_call.1} parent=31 // pred_fallthru
          _
      $region32: #{tpu_custom_call.1} parent=5 // pred_fallthru
        _
      %p257 = scmp.le.s32.totalorder 2, %s14
      // Predicated region
      $region45: #{tpu_custom_call.1} parent=5 // pred_check
        %p258 = pneg %p257
      $region46: #{tpu_custom_call.1} parent=5 // pred_check_branch
        %260 = sbr.rel (%p258) target = $region48
      $region47: #{tpu_custom_call.1} parent=5 // pred_region
        %s261 = ssub.s32 %s14, 2
        // Predicated region
        $region49: #{tpu_custom_call.1} parent=47 // pred_check
          %p262 = pneg %p125
        $region50: #{tpu_custom_call.1} parent=47 // pred_check_branch
          %264 = sbr.rel (%p262) target = $region52
        $region51: #{tpu_custom_call.1} parent=47 // pred_region
          %s265 = sand.u32 %s110, 1
          %s266 = scalar_lea.sflag [#allocation4], %s265
          %s267 = sand.u32 %s110, 1
          %s268 = smul.addr %s267, 8
          %s269 = scalar_lea.vmem [#allocation7], %s268
          %271 = dma.done %s266, 128
        $region52: #{tpu_custom_call.1} parent=47 // pred_fallthru
          _
      $region48: #{tpu_custom_call.1} parent=5 // pred_fallthru
        _
    $region6: #{tpu_custom_call.1} parent=1 // loop_footer
      %s18 = sadd.s32 1, %s14
    $region7: #{tpu_custom_call.1} parent=1 // loop_footer_branch
      %13 = sbr.rel target = $region3
    $region8: #{tpu_custom_call.1} parent=1 // loop_exit
      _
    %272 = vsyncpa [#allocation3], 1
    %s273 = scalar_lea.sflag [#allocation3], 1
    %274 = vsyncpa %s273, 1
    %275 = vsyncpa [#allocation6], 1
    %276 = vsyncpa [#allocation4], 1
    %s277 = scalar_lea.sflag [#allocation4], 1
    %278 = vsyncpa %s277, 1

</llo_original>
